<compile_context>
chip_gen: v6e
topology: v6e:2x2x1
jax: 0.10.0
libtpu: 0.0.40
codegen_flags: <defaults>
</compile_context>

<pallas_src>
import jax
import jax.numpy as jnp
from jax.experimental import pallas as pl
from jax.experimental.pallas import tpu as pltpu


HALO = 8  # sublane-aligned halo rows from the next tile (supports kh <= 9)


def _round_up(a: int, b: int) -> int:
    return (a + b - 1) // b * b


def _cdiv(a: int, b: int) -> int:
    return (a + b - 1) // b


def _make_corr2d_kernel(kh: int, kw: int, w_in: int, w_vmem: int, w_out: int,
                        tile_rows: int, needs_wpad: bool):
    """Build a Pallas kernel specialized for static kernel/width/tile geometry."""
    th = tile_rows

    def conv_rows(buf, nrows, wf):
        # buf: (nrows, w_vmem) f32.  acc[r, c] = sum_{i,j} buf[r+i, c+j]*wf[i][j]
        # valid for r < nrows - kh + 1 and c < w_out; other rows/cols hold
        # wrapped garbage and are never stored.
        acc = None
        for i in range(kh):
            row = buf * wf[i][0]
            for j in range(1, kw):
                # Lane roll (XLU): out[:, c] == buf[:, c + j] for c < w_out.
                # Re-rolled per i so at most one rolled slab is live in VMEM.
                row = row + pltpu.roll(buf, shift=w_vmem - j, axis=1) * wf[i][j]
            if i > 0:
                # Sublane roll (XLU): out[r] == row[r + i] for r < nrows - i.
                row = pltpu.roll(row, shift=nrows - i, axis=0)
            acc = row if acc is None else acc + row
        return acc

    def kernel(x_cur_ref, x_halo_ref, w_ref, b_ref, o_ref, *scratch):
        si = 0
        xpad_ref = None
        if needs_wpad:
            xpad_ref = scratch[si]
            si += 1
        fix_ref = scratch[si] if kh > 1 else None

        # Fold the scalar bias into the kh*kw scalar weights (SMEM scalar-unit
        # math): (x (*) w) * b == x (*) (w * b).  Removes the final full-tile
        # VALU multiply.
        wf = [[w_ref[i, j] * b_ref[0] for j in range(kw)] for i in range(kh)]

        # Current tile as an f32 lane-aligned slab.  Only when the raw width is
        # not a multiple of 128 do we pay one masked VMEM store to pad it.
        if needs_wpad:
            xpad_ref[:, 0:w_in] = x_cur_ref[...].astype(jnp.float32)
            xx = xpad_ref[...]
        else:
            xx = x_cur_ref[...].astype(jnp.float32)   # no-op cast if already f32

        if kh == 1:
            acc = conv_rows(xx, th, wf)
            o_ref[...] = acc[:, 0:w_out].astype(o_ref.dtype)
            return

        # Main body: output rows [0, th - HALO) never need the halo.
        if th > HALO:
            acc_main = conv_rows(xx, th, wf)
            o_ref[0:th - HALO, :] = acc_main[0:th - HALO, 0:w_out].astype(o_ref.dtype)

        # Bottom fixup: the last HALO output rows of the tile read up to kh-1
        # rows of the next tile.  Tiny (2*HALO, w_vmem) buffer instead of a
        # full-slab VMEM->VMEM assembly.
        fix_ref[0:HALO, :] = xx[th - HALO:th, :]
        if needs_wpad:
            fix_ref[HALO:2 * HALO, 0:w_in] = x_halo_ref[...].astype(jnp.float32)
        else:
            fix_ref[HALO:2 * HALO, :] = x_halo_ref[...].astype(jnp.float32)
        acc_fix = conv_rows(fix_ref[...], 2 * HALO, wf)
        o_ref[th - HALO:th, :] = acc_fix[0:HALO, 0:w_out].astype(o_ref.dtype)

    return kernel


def conv2d_forward(x: jax.Array, weight: jax.Array, bias: jax.Array,
                   *, tile_rows: int | None = None) -> jax.Array:
    """Equivalent of Conv2D.forward: corr2d(x, weight) * bias."""
    h_in, w_in = x.shape
    kh, kw = weight.shape
    h_out, w_out = h_in - kh + 1, w_in - kw + 1
    assert h_out >= 1 and w_out >= 1, "kernel larger than input"
    assert kh <= HALO + 1, "kernel height > 9 not supported by the 8-row halo"

    # In-kernel (VMEM) working width: lane-aligned.
    w_vmem = _round_up(w_in, 128)
    needs_wpad = (w_vmem != w_in)

    # Row-tile size: target a ~2 MiB f32 slab, balanced over the grid so the
    # last tile is not mostly padding (matters most on bandwidth-starved v5e).
    if tile_rows is None:
        budget_elems = 512 * 1024                       # 2 MiB of f32
        tr_max = max(8, (budget_elems // w_vmem) // 8 * 8)
        n_min = _cdiv(h_out, tr_max)
        tile_rows = _round_up(_cdiv(h_out, n_min), 8)
    else:
        tile_rows = max(8, tile_rows - tile_rows % 8)
    n_tiles = _cdiv(h_out, tile_rows)

    tr_blocks = tile_rows // HALO
    # Halo block for tile t = first HALO rows after the tile; clamp so the DMA
    # start stays in bounds on the last tile (its content is then only used
    # for output rows >= h_out, which Pallas drops on writeback).
    max_halo_block = max(_cdiv(h_in, HALO) - 1, 0)

    kernel = _make_corr2d_kernel(kh, kw, w_in, w_vmem, w_out, tile_rows, needs_wpad)

    scratch_shapes = []
    if needs_wpad:
        scratch_shapes.append(pltpu.VMEM((tile_rows, w_vmem), jnp.float32))
    if kh > 1:
        scratch_shapes.append(pltpu.VMEM((2 * HALO, w_vmem), jnp.float32))

    grid_spec = pltpu.PrefetchScalarGridSpec(
        num_scalar_prefetch=0,
        grid=(n_tiles,),
        in_specs=[
            # Current row tile: full raw width (full-dim exception) -> no jnp.pad.
            pl.BlockSpec((tile_rows, w_in), lambda t: (t, 0)),
            # 8-row halo: first HALO rows of the next tile (same array), clamped.
            pl.BlockSpec((HALO, w_in),
                         lambda t: (jnp.minimum((t + 1) * tr_blocks,
                                                max_halo_block), 0)),
            # Tiny kernel weights + bias live in SMEM; scalar reads only.
            pl.BlockSpec(memory_space=pltpu.MemorySpace.SMEM),
            pl.BlockSpec(memory_space=pltpu.MemorySpace.SMEM),
        ],
        # Exact (h_out, w_out) output: no post-kernel slice pass over HBM.
        out_specs=pl.BlockSpec((tile_rows, w_out), lambda t: (t, 0)),
        scratch_shapes=scratch_shapes,
    )

    return pl.pallas_call(
        kernel,
        out_shape=jax.ShapeDtypeStruct((h_out, w_out), x.dtype),
        grid_spec=grid_spec,
        compiler_params=pltpu.CompilerParams(
            # Row tiles are independent.  (On v7x, pltpu.CORE_PARALLEL here
            # shards the tile axis across both TensorCores.)
            dimension_semantics=("parallel",),
            vmem_limit_bytes=48 * 1024 * 1024,
        ),
    )(x, x, weight, bias)


def reference_forward(x, weight, bias):
    """Pure-JAX reference mirroring the PyTorch corr2d loops (then * bias)."""
    h_in, w_in = x.shape
    kh, kw = weight.shape
    h_out, w_out = h_in - kh + 1, w_in - kw + 1
    out = jnp.zeros((h_out, w_out), dtype=jnp.float32)
    for i in range(kh):
        for j in range(kw):
            out = out + x[i:i + h_out, j:j + w_out].astype(jnp.float32) * weight[i, j]
    return (out * bias[0]).astype(x.dtype)


if __name__ == "__main__":
    key = jax.random.PRNGKey(0)
    k1, k2, k3, k4, k5, k6 = jax.random.split(key, 6)

    # --- Case 1: exact module semantics (weight=rand(k), bias=zeros(1)) -------
    H, W = 16, 16
    kernel_size = (3, 3)
    x = jax.random.uniform(k1, (H, W), dtype=jnp.float32)
    weight = jax.random.uniform(k2, kernel_size, dtype=jnp.float32)   # torch.rand
    bias = jnp.zeros((1,), dtype=jnp.float32)                         # torch.zeros(1)

    out = jax.block_until_ready(conv2d_forward(x, weight, bias))
    ref = reference_forward(x, weight, bias)
    assert out.shape == (H - kernel_size[0] + 1, W - kernel_size[1] + 1)
    assert jnp.allclose(out, ref, atol=1e-5), "case 1 mismatch vs reference"

    # --- Case 2: nonzero bias, unaligned width, forced multi-tile grid --------
    H2, W2 = 40, 70
    x2 = jax.random.uniform(k3, (H2, W2), dtype=jnp.float32)
    w2 = jax.random.uniform(k4, (3, 5), dtype=jnp.float32)
    b2 = jnp.array([1.7], dtype=jnp.float32)

    out2 = jax.block_until_ready(conv2d_forward(x2, w2, b2, tile_rows=8))
    ref2 = reference_forward(x2, w2, b2)
    assert out2.shape == ref2.shape == (H2 - 2, W2 - 4)
    assert jnp.allclose(out2, ref2, atol=1e-4, rtol=1e-5), "case 2 mismatch vs reference"

    # --- Case 3: lane-aligned width (no in-kernel padding path), multi-tile ---
    H3, W3 = 70, 256
    x3 = jax.random.uniform(k5, (H3, W3), dtype=jnp.float32)
    w3 = jax.random.uniform(k6, (5, 3), dtype=jnp.float32)
    b3 = jnp.array([0.9], dtype=jnp.float32)

    out3 = jax.block_until_ready(conv2d_forward(x3, w3, b3, tile_rows=16))
    ref3 = reference_forward(x3, w3, b3)
    assert out3.shape == ref3.shape == (H3 - 4, W3 - 2)
    assert jnp.allclose(out3, ref3, atol=1e-4, rtol=1e-5), "case 3 mismatch vs reference"

    print("KERNEL_OK")
</pallas_src>

<mosaic_0001>
module attributes {stable_mosaic.version = 11 : i64} {
  func.func @kernel(%arg0: i32, %arg1: memref<16x16xf32, #tpu.memory_space<vmem>>, %arg2: memref<8x16xf32, #tpu.memory_space<vmem>>, %arg3: memref<3x3xf32, #tpu.memory_space<smem>>, %arg4: memref<1xf32, #tpu.memory_space<smem>>, %arg5: memref<16x14xf32, #tpu.memory_space<vmem>>, %arg6: memref<16x128xf32, #tpu.memory_space<vmem>>, %arg7: memref<16x128xf32, #tpu.memory_space<vmem>>) attributes {dimension_semantics = [#tpu.dimension_semantics<parallel>], iteration_bounds = array<i64: 1>, scalar_prefetch = 0 : i64, scratch_operands = 2 : i64, tpu.core_type = #tpu.core_type<tc>, window_params = [{transform_indices = @transform_0, window_bounds = array<i64: 16, 16>}, {transform_indices = @transform_1, window_bounds = array<i64: 8, 16>}, {transform_indices = @transform_2, window_bounds = array<i64: 3, 3>}, {transform_indices = @transform_3, window_bounds = array<i64: 1>}, {transform_indices = @transform_4, window_bounds = array<i64: 16, 14>}]} {
    %c0 = arith.constant 0 : index
    %c0_0 = arith.constant 0 : index
    %0 = memref.load %arg3[%c0, %c0_0] : memref<3x3xf32, #tpu.memory_space<smem>>
    %c0_1 = arith.constant 0 : index
    %1 = memref.load %arg4[%c0_1] : memref<1xf32, #tpu.memory_space<smem>>
    %2 = arith.mulf %0, %1 : f32
    %c0_2 = arith.constant 0 : index
    %c1 = arith.constant 1 : index
    %3 = memref.load %arg3[%c0_2, %c1] : memref<3x3xf32, #tpu.memory_space<smem>>
    %c0_3 = arith.constant 0 : index
    %4 = memref.load %arg4[%c0_3] : memref<1xf32, #tpu.memory_space<smem>>
    %5 = arith.mulf %3, %4 : f32
    %c0_4 = arith.constant 0 : index
    %c2 = arith.constant 2 : index
    %6 = memref.load %arg3[%c0_4, %c2] : memref<3x3xf32, #tpu.memory_space<smem>>
    %c0_5 = arith.constant 0 : index
    %7 = memref.load %arg4[%c0_5] : memref<1xf32, #tpu.memory_space<smem>>
    %8 = arith.mulf %6, %7 : f32
    %c1_6 = arith.constant 1 : index
    %c0_7 = arith.constant 0 : index
    %9 = memref.load %arg3[%c1_6, %c0_7] : memref<3x3xf32, #tpu.memory_space<smem>>
    %c0_8 = arith.constant 0 : index
    %10 = memref.load %arg4[%c0_8] : memref<1xf32, #tpu.memory_space<smem>>
    %11 = arith.mulf %9, %10 : f32
    %c1_9 = arith.constant 1 : index
    %c1_10 = arith.constant 1 : index
    %12 = memref.load %arg3[%c1_9, %c1_10] : memref<3x3xf32, #tpu.memory_space<smem>>
    %c0_11 = arith.constant 0 : index
    %13 = memref.load %arg4[%c0_11] : memref<1xf32, #tpu.memory_space<smem>>
    %14 = arith.mulf %12, %13 : f32
    %c1_12 = arith.constant 1 : index
    %c2_13 = arith.constant 2 : index
    %15 = memref.load %arg3[%c1_12, %c2_13] : memref<3x3xf32, #tpu.memory_space<smem>>
    %c0_14 = arith.constant 0 : index
    %16 = memref.load %arg4[%c0_14] : memref<1xf32, #tpu.memory_space<smem>>
    %17 = arith.mulf %15, %16 : f32
    %c2_15 = arith.constant 2 : index
    %c0_16 = arith.constant 0 : index
    %18 = memref.load %arg3[%c2_15, %c0_16] : memref<3x3xf32, #tpu.memory_space<smem>>
    %c0_17 = arith.constant 0 : index
    %19 = memref.load %arg4[%c0_17] : memref<1xf32, #tpu.memory_space<smem>>
    %20 = arith.mulf %18, %19 : f32
    %c2_18 = arith.constant 2 : index
    %c1_19 = arith.constant 1 : index
    %21 = memref.load %arg3[%c2_18, %c1_19] : memref<3x3xf32, #tpu.memory_space<smem>>
    %c0_20 = arith.constant 0 : index
    %22 = memref.load %arg4[%c0_20] : memref<1xf32, #tpu.memory_space<smem>>
    %23 = arith.mulf %21, %22 : f32
    %c2_21 = arith.constant 2 : index
    %c2_22 = arith.constant 2 : index
    %24 = memref.load %arg3[%c2_21, %c2_22] : memref<3x3xf32, #tpu.memory_space<smem>>
    %c0_23 = arith.constant 0 : index
    %25 = memref.load %arg4[%c0_23] : memref<1xf32, #tpu.memory_space<smem>>
    %26 = arith.mulf %24, %25 : f32
    %c0_24 = arith.constant 0 : index
    %c0_25 = arith.constant 0 : index
    %27 = vector.load %arg1[%c0_24, %c0_25] : memref<16x16xf32, #tpu.memory_space<vmem>>, vector<16x16xf32>
    %c0_26 = arith.constant 0 : index
    %c0_27 = arith.constant 0 : index
    %28 = vector.load %arg6[%c0_26, %c0_27] : memref<16x128xf32, #tpu.memory_space<vmem>>, vector<16x16xf32>
    tpu.vector_store %arg6[%c0_26, %c0_27], %27 {strides = array<i32>} : memref<16x128xf32, #tpu.memory_space<vmem>>, vector<16x16xf32>,
    %c0_28 = arith.constant 0 : index
    %c0_29 = arith.constant 0 : index
    %29 = vector.load %arg6[%c0_28, %c0_29] : memref<16x128xf32, #tpu.memory_space<vmem>>, vector<16x128xf32>
    %30 = vector.broadcast %2 : f32 to vector<16x128xf32>
    %31 = arith.mulf %29, %30 : vector<16x128xf32>
    %c127_i32 = arith.constant 127 : i32
    %32 = tpu.dynamic_rotate %29 by %c127_i32 dim 1 : vector<16x128xf32>, i32 -> vector<16x128xf32>
    %33 = vector.broadcast %5 : f32 to vector<16x128xf32>
    %34 = arith.mulf %32, %33 : vector<16x128xf32>
    %35 = arith.addf %31, %34 : vector<16x128xf32>
    %c126_i32 = arith.constant 126 : i32
    %36 = tpu.dynamic_rotate %29 by %c126_i32 dim 1 : vector<16x128xf32>, i32 -> vector<16x128xf32>
    %37 = vector.broadcast %8 : f32 to vector<16x128xf32>
    %38 = arith.mulf %36, %37 : vector<16x128xf32>
    %39 = arith.addf %35, %38 : vector<16x128xf32>
    %40 = vector.broadcast %11 : f32 to vector<16x128xf32>
    %41 = arith.mulf %29, %40 : vector<16x128xf32>
    %c127_i32_30 = arith.constant 127 : i32
    %42 = tpu.dynamic_rotate %29 by %c127_i32_30 dim 1 : vector<16x128xf32>, i32 -> vector<16x128xf32>
    %43 = vector.broadcast %14 : f32 to vector<16x128xf32>
    %44 = arith.mulf %42, %43 : vector<16x128xf32>
    %45 = arith.addf %41, %44 : vector<16x128xf32>
    %c126_i32_31 = arith.constant 126 : i32
    %46 = tpu.dynamic_rotate %29 by %c126_i32_31 dim 1 : vector<16x128xf32>, i32 -> vector<16x128xf32>
    %47 = vector.broadcast %17 : f32 to vector<16x128xf32>
    %48 = arith.mulf %46, %47 : vector<16x128xf32>
    %49 = arith.addf %45, %48 : vector<16x128xf32>
    %c15_i32 = arith.constant 15 : i32
    %50 = tpu.dynamic_rotate %49 by %c15_i32 dim 0 : vector<16x128xf32>, i32 -> vector<16x128xf32>
    %51 = arith.addf %39, %50 : vector<16x128xf32>
    %52 = vector.broadcast %20 : f32 to vector<16x128xf32>
    %53 = arith.mulf %29, %52 : vector<16x128xf32>
    %c127_i32_32 = arith.constant 127 : i32
    %54 = tpu.dynamic_rotate %29 by %c127_i32_32 dim 1 : vector<16x128xf32>, i32 -> vector<16x128xf32>
    %55 = vector.broadcast %23 : f32 to vector<16x128xf32>
    %56 = arith.mulf %54, %55 : vector<16x128xf32>
    %57 = arith.addf %53, %56 : vector<16x128xf32>
    %c126_i32_33 = arith.constant 126 : i32
    %58 = tpu.dynamic_rotate %29 by %c126_i32_33 dim 1 : vector<16x128xf32>, i32 -> vector<16x128xf32>
    %59 = vector.broadcast %26 : f32 to vector<16x128xf32>
    %60 = arith.mulf %58, %59 : vector<16x128xf32>
    %61 = arith.addf %57, %60 : vector<16x128xf32>
    %c14_i32 = arith.constant 14 : i32
    %62 = tpu.dynamic_rotate %61 by %c14_i32 dim 0 : vector<16x128xf32>, i32 -> vector<16x128xf32>
    %63 = arith.addf %51, %62 : vector<16x128xf32>
    %64 = vector.extract_strided_slice %63 {offsets = [0, 0], sizes = [8, 14], strides = [1, 1]} : vector<16x128xf32> to vector<8x14xf32>
    %c0_34 = arith.constant 0 : index
    %c0_35 = arith.constant 0 : index
    %65 = vector.load %arg5[%c0_34, %c0_35] : memref<16x14xf32, #tpu.memory_space<vmem>>, vector<8x14xf32>
    tpu.vector_store %arg5[%c0_34, %c0_35], %64 {strides = array<i32>} : memref<16x14xf32, #tpu.memory_space<vmem>>, vector<8x14xf32>,
    %66 = vector.extract_strided_slice %29 {offsets = [8, 0], sizes = [8, 128], strides = [1, 1]} : vector<16x128xf32> to vector<8x128xf32>
    %c0_36 = arith.constant 0 : index
    %c0_37 = arith.constant 0 : index
    %67 = vector.load %arg7[%c0_36, %c0_37] : memref<16x128xf32, #tpu.memory_space<vmem>>, vector<8x128xf32>
    tpu.vector_store %arg7[%c0_36, %c0_37], %66 {strides = array<i32>} : memref<16x128xf32, #tpu.memory_space<vmem>>, vector<8x128xf32>,
    %c0_38 = arith.constant 0 : index
    %c0_39 = arith.constant 0 : index
    %68 = vector.load %arg2[%c0_38, %c0_39] : memref<8x16xf32, #tpu.memory_space<vmem>>, vector<8x16xf32>
    %c8 = arith.constant 8 : index
    %c0_40 = arith.constant 0 : index
    %69 = vector.load %arg7[%c8, %c0_40] : memref<16x128xf32, #tpu.memory_space<vmem>>, vector<8x16xf32>
    tpu.vector_store %arg7[%c8, %c0_40], %68 {strides = array<i32>} : memref<16x128xf32, #tpu.memory_space<vmem>>, vector<8x16xf32>,
    %c0_41 = arith.constant 0 : index
    %c0_42 = arith.constant 0 : index
    %70 = vector.load %arg7[%c0_41, %c0_42] : memref<16x128xf32, #tpu.memory_space<vmem>>, vector<16x128xf32>
    %71 = vector.broadcast %2 : f32 to vector<16x128xf32>
    %72 = arith.mulf %70, %71 : vector<16x128xf32>
    %c127_i32_43 = arith.constant 127 : i32
    %73 = tpu.dynamic_rotate %70 by %c127_i32_43 dim 1 : vector<16x128xf32>, i32 -> vector<16x128xf32>
    %74 = vector.broadcast %5 : f32 to vector<16x128xf32>
    %75 = arith.mulf %73, %74 : vector<16x128xf32>
    %76 = arith.addf %72, %75 : vector<16x128xf32>
    %c126_i32_44 = arith.constant 126 : i32
    %77 = tpu.dynamic_rotate %70 by %c126_i32_44 dim 1 : vector<16x128xf32>, i32 -> vector<16x128xf32>
    %78 = vector.broadcast %8 : f32 to vector<16x128xf32>
    %79 = arith.mulf %77, %78 : vector<16x128xf32>
    %80 = arith.addf %76, %79 : vector<16x128xf32>
    %81 = vector.broadcast %11 : f32 to vector<16x128xf32>
    %82 = arith.mulf %70, %81 : vector<16x128xf32>
    %c127_i32_45 = arith.constant 127 : i32
    %83 = tpu.dynamic_rotate %70 by %c127_i32_45 dim 1 : vector<16x128xf32>, i32 -> vector<16x128xf32>
    %84 = vector.broadcast %14 : f32 to vector<16x128xf32>
    %85 = arith.mulf %83, %84 : vector<16x128xf32>
    %86 = arith.addf %82, %85 : vector<16x128xf32>
    %c126_i32_46 = arith.constant 126 : i32
    %87 = tpu.dynamic_rotate %70 by %c126_i32_46 dim 1 : vector<16x128xf32>, i32 -> vector<16x128xf32>
    %88 = vector.broadcast %17 : f32 to vector<16x128xf32>
    %89 = arith.mulf %87, %88 : vector<16x128xf32>
    %90 = arith.addf %86, %89 : vector<16x128xf32>
    %c15_i32_47 = arith.constant 15 : i32
    %91 = tpu.dynamic_rotate %90 by %c15_i32_47 dim 0 : vector<16x128xf32>, i32 -> vector<16x128xf32>
    %92 = arith.addf %80, %91 : vector<16x128xf32>
    %93 = vector.broadcast %20 : f32 to vector<16x128xf32>
    %94 = arith.mulf %70, %93 : vector<16x128xf32>
    %c127_i32_48 = arith.constant 127 : i32
    %95 = tpu.dynamic_rotate %70 by %c127_i32_48 dim 1 : vector<16x128xf32>, i32 -> vector<16x128xf32>
    %96 = vector.broadcast %23 : f32 to vector<16x128xf32>
    %97 = arith.mulf %95, %96 : vector<16x128xf32>
    %98 = arith.addf %94, %97 : vector<16x128xf32>
    %c126_i32_49 = arith.constant 126 : i32
    %99 = tpu.dynamic_rotate %70 by %c126_i32_49 dim 1 : vector<16x128xf32>, i32 -> vector<16x128xf32>
    %100 = vector.broadcast %26 : f32 to vector<16x128xf32>
    %101 = arith.mulf %99, %100 : vector<16x128xf32>
    %102 = arith.addf %98, %101 : vector<16x128xf32>
    %c14_i32_50 = arith.constant 14 : i32
    %103 = tpu.dynamic_rotate %102 by %c14_i32_50 dim 0 : vector<16x128xf32>, i32 -> vector<16x128xf32>
    %104 = arith.addf %92, %103 : vector<16x128xf32>
    %105 = vector.extract_strided_slice %104 {offsets = [0, 0], sizes = [8, 14], strides = [1, 1]} : vector<16x128xf32> to vector<8x14xf32>
    %c8_51 = arith.constant 8 : index
    %c0_52 = arith.constant 0 : index
    %106 = vector.load %arg5[%c8_51, %c0_52] : memref<16x14xf32, #tpu.memory_space<vmem>>, vector<8x14xf32>
    tpu.vector_store %arg5[%c8_51, %c0_52], %105 {strides = array<i32>} : memref<16x14xf32, #tpu.memory_space<vmem>>, vector<8x14xf32>,
    return
  }
  func.func @transform_0(%arg0: i32) -> (i32, i32) {
    %c0_i32 = arith.constant 0 : i32
    %c0_i32_0 = arith.constant 0 : i32
    return %arg0, %c0_i32 : i32, i32
  }
  func.func @transform_1(%arg0: i32) -> (i32, i32) {
    %c1_i32 = arith.constant 1 : i32
    %0 = arith.addi %arg0, %c1_i32 : i32
    %c2_i32 = arith.constant 2 : i32
    %1 = arith.muli %0, %c2_i32 : i32
    %c1_i32_0 = arith.constant 1 : i32
    %2 = arith.minsi %1, %c1_i32_0 : i32
    %c0_i32 = arith.constant 0 : i32
    %c0_i32_1 = arith.constant 0 : i32
    return %2, %c0_i32 : i32, i32
  }
  func.func @transform_2(%arg0: i32) -> (i32, i32) {
    %c0_i32 = arith.constant 0 : i32
    %c0_i32_0 = arith.constant 0 : i32
    %c0_i32_1 = arith.constant 0 : i32
    return %c0_i32, %c0_i32_0 : i32, i32
  }
  func.func @transform_3(%arg0: i32) -> i32 {
    %c0_i32 = arith.constant 0 : i32
    %c0_i32_0 = arith.constant 0 : i32
    return %c0_i32 : i32
  }
  func.func @transform_4(%arg0: i32) -> (i32, i32) {
    %c0_i32 = arith.constant 0 : i32
    %c0_i32_0 = arith.constant 0 : i32
    return %arg0, %c0_i32 : i32, i32
  }
}

</mosaic_0001>

<llo_original>
// kernel: tpu_custom_call.1
$region0: #{tpu_custom_call.1}
  #allocation0 [shape = 'u32[]', space=smem, size = 0x4, offset = 0x4, fixed_abs, tag = 'smem constant byte address 0x4 - core index']
  #allocation1 [shape = 'u32[144,128]{1,0:T(1,128)}', space=vmem, size = 0x12000, scoped, tag = 'internal scratch']
  #allocation2 [shape = 'f32[16,128]{1,0:T(8,128)}', space=vmem, size = 0x2000, scoped, tag = 'scratch operand']
  #allocation3 [shape = 'f32[16,128]{1,0:T(8,128)}', space=vmem, size = 0x2000, scoped, tag = 'scratch operand']
  #allocation4 [shape = 'f32[1]{0:T(128)S(6)}', space=smem, size = 0x200, scoped, tag = 'scoped memory for tpu_custom_call.1']
  %s0 = inlined_call_operand.hbm [shape: f32[16,16], index: 0, kind: input, shape index: {}]
  %s1 = inlined_call_operand.hbm [shape: f32[16,16], index: 1, kind: input, shape index: {}]
  %s2 = inlined_call_operand.vmem [shape: f32[3,3], index: 2, kind: input, shape index: {}]
  %s3 = inlined_call_operand.<no memory space> [shape: f32[1], index: 3, kind: input, shape index: {}]
  %s4 = inlined_call_operand.hbm [shape: f32[14,14], index: 4, kind: output, shape index: {}]
  %s5 = sld [smem:[#allocation0]]
  $region38: #{tpu_custom_call.1} parent=0
    _
  %s7 = ssub.s32 1, %s5
  %s8 = scalar_select 0, %s7, %s5
  %9 = sst [smem:[#allocation4]] %s3
  $region1: #{tpu_custom_call.1} parent=0
    #allocation5 [shape = 'u8[8192]{0}', space=vmem, size = 0x2000, scoped, tag = 'input window, operand 0, single buffered']
    #allocation6 [shape = 's32[1]{0}', space=sflag, size = 0x4, scoped, tag = 'scoped memory for tpu_custom_call.1']
    #allocation7 [shape = 's32[1]{0}', space=sflag, size = 0x4, scoped, tag = 'scoped memory for tpu_custom_call.1']
    #allocation8 [shape = 's32[1]{0}', space=sflag, size = 0x4, scoped, tag = 'scoped memory for tpu_custom_call.1']
    #allocation9 [shape = 'u8[4096]{0}', space=vmem, size = 0x1000, scoped, tag = 'input window, operand 1, single buffered']
    #allocation10 [shape = 's32[1]{0}', space=sflag, size = 0x4, scoped, tag = 'scoped memory for tpu_custom_call.1']
    #allocation11 [shape = 'u8[2048]{0}', space=smem, size = 0x800, scoped, tag = 'input window, operand 2, single buffered']
    #allocation12 [shape = 'u8[8192]{0}', space=vmem, size = 0x2000, scoped, tag = 'output window, operand 0, single buffered']
    %10 = vsyncpa [#allocation6], 0
    %11 = vsyncpa [#allocation10], 0
    %12 = vsyncpa [#allocation8], 0
    %13 = vsyncpa [#allocation7], 0
    // Predicated region
    $region2: #{tpu_custom_call.1} parent=1 // pred_check
      _
    $region3: #{tpu_custom_call.1} parent=1 // pred_check_branch
      %15 = sbr.rel (0) target = $region5
    $region4: #{tpu_custom_call.1} parent=1 // pred_region
      %s17 = ssub.s32 256, 256
      %18 = vsyncadd [#allocation6], %s17
      %s19 = sshll.u32 [#allocation5], 4
      %s20 = int_to_ptr.vmem [resolvable:$true] %s19
      %25 = dma.hbm_to_vmem [thread:$0]  %s0, 256, %s20, [#allocation6], 128, 128, 8
    $region5: #{tpu_custom_call.1} parent=1 // pred_fallthru
      _
    // Predicated region
    $region6: #{tpu_custom_call.1} parent=1 // pred_check
      _
    $region7: #{tpu_custom_call.1} parent=1 // pred_check_branch
      %27 = sbr.rel (0) target = $region9
    $region8: #{tpu_custom_call.1} parent=1 // pred_region
      %s28 = sadd.s32 0, 1
      %s29 = smul.u32 %s28, 2
      %p30 = scmp.lt.s32.totalorder %s29, 1
      %s31 = scalar_select %p30, %s29, 1
      %s33 = ssub.s32 128, 128
      %34 = vsyncadd [#allocation10], %s33
      %s35 = smul.addr %s31, 128
      %s36 = scalar_lea.hbm %s1, %s35
      %s38 = sshll.u32 [#allocation9], 4
      %s39 = int_to_ptr.vmem [resolvable:$true] %s38
      %41 = dma.hbm_to_vmem [thread:$0]  %s36, 128, %s39, [#allocation10]
    $region9: #{tpu_custom_call.1} parent=1 // pred_fallthru
      _
    // Predicated region
    $region10: #{tpu_custom_call.1} parent=1 // pred_check
      _
    $region11: #{tpu_custom_call.1} parent=1 // pred_check_branch
      %43 = sbr.rel (0) target = $region13
    $region12: #{tpu_custom_call.1} parent=1 // pred_region
      %s45 = ssub.s32 64, 64
      %46 = vsyncadd [#allocation8], %s45
      %s48 = sshll.u32 %s2, 4
      %s49 = int_to_ptr.vmem [resolvable:$true] %s48
      %51 = dma.vmem_to_smem %s49, 64, [#allocation11], [#allocation8]
    $region13: #{tpu_custom_call.1} parent=1 // pred_fallthru
      _
    // Predicated region
    $region14: #{tpu_custom_call.1} parent=1 // pred_check
      _
    $region15: #{tpu_custom_call.1} parent=1 // pred_check_branch
      %53 = sbr.rel (0) target = $region17
    $region16: #{tpu_custom_call.1} parent=1 // pred_region
      _
    $region17: #{tpu_custom_call.1} parent=1 // pred_fallthru
      _
    // Predicated region
    $region18: #{tpu_custom_call.1} parent=1 // pred_check
      _
    $region19: #{tpu_custom_call.1} parent=1 // pred_check_branch
      %55 = sbr.rel (0) target = $region21
    $region20: #{tpu_custom_call.1} parent=1 // pred_region
      %56 = dma.done [#allocation6], 256
    $region21: #{tpu_custom_call.1} parent=1 // pred_fallthru
      _
    // Predicated region
    $region22: #{tpu_custom_call.1} parent=1 // pred_check
      _
    $region23: #{tpu_custom_call.1} parent=1 // pred_check_branch
      %58 = sbr.rel (0) target = $region25
    $region24: #{tpu_custom_call.1} parent=1 // pred_region
      %59 = dma.done [#allocation10], 128
    $region25: #{tpu_custom_call.1} parent=1 // pred_fallthru
      _
    // Predicated region
    $region26: #{tpu_custom_call.1} parent=1 // pred_check
      _
    $region27: #{tpu_custom_call.1} parent=1 // pred_check_branch
      %61 = sbr.rel (0) target = $region29
    $region28: #{tpu_custom_call.1} parent=1 // pred_region
      %62 = dma.done [#allocation8], 64
    $region29: #{tpu_custom_call.1} parent=1 // pred_fallthru
      _
    %63 = sfence
    %s64 = sadd.s32 0, 1
    %s65 = smul.u32 %s64, 2
    %p66 = scmp.lt.s32.totalorder %s65, 1
    %s67 = scalar_select %p66, %s65, 1
    %s68 = sld [smem:[#allocation11]]
    %s69 = sld [smem:[#allocation4]]
    %s70 = smul.f32 %s68, %s69
    %s71 = sld [smem:[#allocation11 + $0x1]]
    %s72 = smul.f32 %s71, %s69
    %s73 = sld [smem:[#allocation11 + $0x2]]
    %s74 = smul.f32 %s73, %s69
    %s75 = sld [smem:[#allocation11 + $0x80]]
    %s76 = smul.f32 %s75, %s69
    %s77 = sld [smem:[#allocation11 + $0x81]]
    %s78 = smul.f32 %s77, %s69
    %s79 = sld [smem:[#allocation11 + $0x82]]
    %s80 = smul.f32 %s79, %s69
    %s81 = sld [smem:[#allocation11 + $0x100]]
    %s82 = smul.f32 %s81, %s69
    %s83 = sld [smem:[#allocation11 + $0x101]]
    %s84 = smul.f32 %s83, %s69
    %s85 = sld [smem:[#allocation11 + $0x102]]
    %s86 = smul.f32 %s85, %s69
    %v87 = vld [vmem:[#allocation5] sm:$0xff]
    %v88 = vld [vmem:[#allocation5 + $0x8] sm:$0xff]
    %vm89 = vcmask 130048
    %90 = vst.msk [vmem:[#allocation2] sm:$0xff] %vm89, %v87
    %91 = vst.msk [vmem:[#allocation2 + $0x8] sm:$0xff] %vm89, %v88
    %v92 = vld [vmem:[#allocation2] sm:$0xff]
    %v93 = vld [vmem:[#allocation2 + $0x8] sm:$0xff]
    %v94 = vstv %s70
    %v95 = vmul.f32 %v92, %v94
    %96 = vrot.lane.b32.xlu0 %v92, 127
    %v97 = vpop.permute.xlu0 %96
    %98 = vrot.lane.b32.xlu0 %v93, 127
    %v99 = vpop.permute.xlu0 %98
    %v100 = vstv %s72
    %v101 = vmul.f32 %v97, %v100
    %v102 = vadd.f32 %v95, %v101
    %103 = vrot.lane.b32.xlu0 %v92, 126
    %v104 = vpop.permute.xlu0 %103
    %105 = vrot.lane.b32.xlu0 %v93, 126
    %v106 = vpop.permute.xlu0 %105
    %v107 = vstv %s74
    %v108 = vmul.f32 %v104, %v107
    %v109 = vadd.f32 %v102, %v108
    %v110 = vstv %s76
    %v111 = vmul.f32 %v92, %v110
    %v112 = vmul.f32 %v93, %v110
    %v113 = vstv %s78
    %v114 = vmul.f32 %v97, %v113
    %v115 = vmul.f32 %v99, %v113
    %v116 = vadd.f32 %v111, %v114
    %v117 = vadd.f32 %v112, %v115
    %v118 = vstv %s80
    %v119 = vmul.f32 %v104, %v118
    %v120 = vmul.f32 %v106, %v118
    %v121 = vadd.f32 %v116, %v119
    %v122 = vadd.f32 %v117, %v120
    %v123 = vrot.slane %v121, 1
    %v124 = vrot.slane %v122, 1
    %v125 = vlaneseq
    %v126 = vshrl.u32 %v125, 7
    %vm127 = vcmp.lt.s32.totalorder %v126, 7
    %v128 = vsel %vm127, %v123, %v124
    %v129 = vadd.f32 %v109, %v128
    %v130 = vstv %s82
    %v131 = vmul.f32 %v92, %v130
    %v132 = vmul.f32 %v93, %v130
    %v133 = vstv %s84
    %v134 = vmul.f32 %v97, %v133
    %v135 = vmul.f32 %v99, %v133
    %v136 = vadd.f32 %v131, %v134
    %v137 = vadd.f32 %v132, %v135
    %v138 = vstv %s86
    %v139 = vmul.f32 %v104, %v138
    %v140 = vmul.f32 %v106, %v138
    %v141 = vadd.f32 %v136, %v139
    %v142 = vadd.f32 %v137, %v140
    %v143 = vrot.slane %v141, 2
    %v144 = vrot.slane %v142, 2
    %vm145 = vcmp.lt.s32.totalorder %v126, 6
    %v146 = vsel %vm145, %v143, %v144
    %v147 = vadd.f32 %v129, %v146
    %vm148 = vcmask 113664
    %149 = vst.msk [vmem:[#allocation12] sm:$0xff] %vm148, %v147
    %150 = vst [vmem:[#allocation3] sm:$0xff] %v93
    %v151 = vld [vmem:[#allocation9] sm:$0xff]
    %152 = vst.msk [vmem:[#allocation3 + $0x8] sm:$0xff] %vm89, %v151
    %v153 = vld [vmem:[#allocation3] sm:$0xff]
    %v154 = vld [vmem:[#allocation3 + $0x8] sm:$0xff]
    %v155 = vmul.f32 %v153, %v94
    %156 = vrot.lane.b32.xlu0 %v153, 127
    %v157 = vpop.permute.xlu0 %156
    %158 = vrot.lane.b32.xlu0 %v154, 127
    %v159 = vpop.permute.xlu0 %158
    %v160 = vmul.f32 %v157, %v100
    %v161 = vadd.f32 %v155, %v160
    %162 = vrot.lane.b32.xlu0 %v153, 126
    %v163 = vpop.permute.xlu0 %162
    %164 = vrot.lane.b32.xlu0 %v154, 126
    %v165 = vpop.permute.xlu0 %164
    %v166 = vmul.f32 %v163, %v107
    %v167 = vadd.f32 %v161, %v166
    %v168 = vmul.f32 %v153, %v110
    %v169 = vmul.f32 %v154, %v110
    %v170 = vmul.f32 %v157, %v113
    %v171 = vmul.f32 %v159, %v113
    %v172 = vadd.f32 %v168, %v170
    %v173 = vadd.f32 %v169, %v171
    %v174 = vmul.f32 %v163, %v118
    %v175 = vmul.f32 %v165, %v118
    %v176 = vadd.f32 %v172, %v174
    %v177 = vadd.f32 %v173, %v175
    %v178 = vrot.slane %v176, 1
    %v179 = vrot.slane %v177, 1
    %v180 = vsel %vm127, %v178, %v179
    %v181 = vadd.f32 %v167, %v180
    %v182 = vmul.f32 %v153, %v130
    %v183 = vmul.f32 %v154, %v130
    %v184 = vmul.f32 %v157, %v133
    %v185 = vmul.f32 %v159, %v133
    %v186 = vadd.f32 %v182, %v184
    %v187 = vadd.f32 %v183, %v185
    %v188 = vmul.f32 %v163, %v138
    %v189 = vmul.f32 %v165, %v138
    %v190 = vadd.f32 %v186, %v188
    %v191 = vadd.f32 %v187, %v189
    %v192 = vrot.slane %v190, 2
    %v193 = vrot.slane %v191, 2
    %v194 = vsel %vm145, %v192, %v193
    %v195 = vadd.f32 %v181, %v194
    %196 = vst.msk [vmem:[#allocation12 + $0x8] sm:$0xff] %vm148, %v195
    // Predicated region
    $region30: #{tpu_custom_call.1} parent=1 // pred_check
      _
    $region31: #{tpu_custom_call.1} parent=1 // pred_check_branch
      %198 = sbr.rel (0) target = $region33
    $region32: #{tpu_custom_call.1} parent=1 // pred_region
      %s200 = ssub.s32 256, 256
      %201 = vsyncadd [#allocation7], %s200
      %s202 = sshll.u32 [#allocation12], 4
      %s203 = int_to_ptr.vmem [resolvable:$true] %s202
      %208 = dma.vmem_to_hbm [thread:$0]  %s203, 256, %s4, [#allocation7], 128, 128, 8
    $region33: #{tpu_custom_call.1} parent=1 // pred_fallthru
      _
    // Predicated region
    $region34: #{tpu_custom_call.1} parent=1 // pred_check
      _
    $region35: #{tpu_custom_call.1} parent=1 // pred_check_branch
      %210 = sbr.rel (0) target = $region37
    $region36: #{tpu_custom_call.1} parent=1 // pred_region
      %211 = dma.done [#allocation7], 256
    $region37: #{tpu_custom_call.1} parent=1 // pred_fallthru
      _
    %212 = vsyncpa [#allocation6], 1
    %213 = vsyncpa [#allocation10], 1
    %214 = vsyncpa [#allocation7], 1
    %215 = vsyncpa [#allocation8], 1

</llo_original>
